<compile_context>
chip_gen: v7x
topology: tpu7x:2x2x1
jax: 0.10.0
libtpu: 0.0.40
codegen_flags: <defaults>
</compile_context>

<pallas_src>
import functools

import jax
import jax.numpy as jnp
from jax.experimental import pallas as pl
from jax.experimental.pallas import tpu as pltpu

LANE = 128                      # vreg lane width
TARGET_BLOCK_BYTES = 4 << 20    # ~4 MiB of native-dtype bytes per streamed block
N_SUB = 8                       # inner sub-slices per full-size block (bounds f32 temps)


def _round_up(x: int, m: int) -> int:
    return ((x + m - 1) // m) * m


def _two_tensorcores() -> bool:
    # v7x packs 2 TensorCores per chip (one jax device); v5e/v6e have 1.
    try:
        kind = jax.devices()[0].device_kind.lower()
    except Exception:
        return False
    return ("v7" in kind) or ("7x" in kind)


def _make_lsgan_kernel(target, tm, n_sub, rows_valid, steps_per_chunk,
                       full_blocks, needs_mask):
    """All closure values are Python scalars — nothing jnp-typed is captured."""
    sub_rows = tm // n_sub
    is_fake = (target == 0.0)

    def _tile_sum(x_ref, base_row, masked):
        # Fold the (tm, 128) tile to an (8, 128) partial sum with pure VPU adds,
        # sub_rows rows at a time, so f32 temporaries stay <= ~1 MiB and never
        # round-trip a full-block intermediate through VMEM.
        def body(i, acc):
            r0 = pl.multiple_of(i * sub_rows, sub_rows)
            xs = x_ref[pl.ds(r0, sub_rows), :].astype(jnp.float32)
            d = xs if is_fake else xs - 1.0          # 'fake' path skips the subtract
            sq = d * d
            if masked:
                # Stale / over-run rows are squared BEFORE the select; jnp.where
                # still yields exact 0.0 for them even if they decode to NaN/Inf.
                # Do not reorder this mask after the reduction.
                rid = (base_row + r0
                       + jax.lax.broadcasted_iota(jnp.int32, (sub_rows, LANE), 0))
                sq = jnp.where(rid < rows_valid, sq, 0.0)
            return acc + sq.reshape(sub_rows // 8, 8, LANE).sum(axis=0)

        return jax.lax.fori_loop(0, n_sub, body,
                                 jnp.zeros((8, LANE), jnp.float32),
                                 unroll=True)

    def _kernel(x_ref, out_ref):
        c = pl.program_id(0)   # chunk (TensorCore) axis
        s = pl.program_id(1)   # streaming / reduction axis

        @pl.when(s == 0)
        def _():
            out_ref[...] = jnp.zeros_like(out_ref)

        b = c * steps_per_chunk + s                  # nominal (unclamped) block index
        if needs_mask:
            # Only the partial last block / clamped duplicate blocks pay for the
            # iota + compare + select; every full block takes the lean path.
            @pl.when(b < full_blocks)
            def _():
                out_ref[0] += _tile_sum(x_ref, 0, masked=False)

            @pl.when(b >= full_blocks)
            def _():
                out_ref[0] += _tile_sum(x_ref, b * tm, masked=True)
        else:
            out_ref[0] += _tile_sum(x_ref, 0, masked=False)

    return _kernel


@functools.partial(jax.jit, static_argnames=("mode",))
def lsgan_adversarial_loss(sample: jax.Array, mode: str) -> jax.Array:
    assert mode in ("real", "fake")
    target = 1.0 if mode == "real" else 0.0
    batch = sample.shape[0]

    itemsize = jnp.dtype(sample.dtype).itemsize
    sub_pack = max(8, 8 * (4 // max(1, itemsize)))        # 8 f32 / 16 bf16 / 32 int8 sublanes
    max_tm = max(sub_pack * N_SUB, TARGET_BLOCK_BYTES // (LANE * itemsize))

    x_flat = sample.reshape(-1)                           # native dtype, no extra HBM pass
    total = x_flat.shape[0]

    # Lane-aligned prefix goes through the kernel; a <128-element tail (rare for
    # discriminator maps) is summed by a tiny XLA op instead of re-padding the
    # whole tensor in HBM.
    rows = total // LANE
    main = rows * LANE

    def _sq_sum(v):
        v = v.astype(jnp.float32)
        if target != 0.0:
            v = v - 1.0
        return jnp.sum(v * v)

    tail_sum = _sq_sum(x_flat[main:]) if main != total else jnp.float32(0.0)

    if rows == 0:
        kernel_sum = jnp.float32(0.0)
    else:
        x2d = (x_flat[:main] if main != total else x_flat).reshape(rows, LANE)

        tm = min(max_tm, _round_up(rows, sub_pack))
        n_sub = N_SUB if tm == max_tm else 1              # chunked inner loop only for big blocks

        steps_total = pl.cdiv(rows, tm)
        n_chunks = 2 if (_two_tensorcores() and steps_total >= 2) else 1
        steps = pl.cdiv(steps_total, n_chunks)
        last_block = steps_total - 1
        full_blocks = rows // tm                          # blocks with no over-run rows
        needs_mask = (n_chunks * steps * tm) != rows

        if n_chunks == 2:
            chunk_sem = getattr(pltpu, "CORE_PARALLEL", pltpu.PARALLEL)
        else:
            chunk_sem = pltpu.ARBITRARY

        partials = pl.pallas_call(
            _make_lsgan_kernel(target, tm, n_sub, rows, steps,
                               full_blocks, needs_mask),
            out_shape=jax.ShapeDtypeStruct((n_chunks, 8, LANE), jnp.float32),
            grid=(n_chunks, steps),
            in_specs=[pl.BlockSpec(
                (tm, LANE),
                # Clamp so an over-run step of chunk 1 never issues an OOB DMA;
                # its contribution is zeroed by the in-kernel row mask.
                lambda c, s, _steps=steps, _last=last_block:
                    (jnp.minimum(c * _steps + s, _last), 0))],
            out_specs=pl.BlockSpec((1, 8, LANE), lambda c, s: (c, 0, 0)),
            compiler_params=pltpu.CompilerParams(
                dimension_semantics=(chunk_sem, pltpu.ARBITRARY)),
            cost_estimate=pl.CostEstimate(
                flops=3 * total,
                transcendentals=0,
                bytes_accessed=total * itemsize + n_chunks * 8 * LANE * 4),
        )(x2d)
        kernel_sum = jnp.sum(partials)

    # Returned in sample.dtype (matches nn.MSELoss on same-dtype inputs; a bf16
    # return loses precision vs PyTorch's accumulation, same as the reference).
    return ((kernel_sum + tail_sum) / batch).astype(sample.dtype)


def _reference(sample, mode):
    target = 1.0 if mode == "real" else 0.0
    d = sample.astype(jnp.float32) - target
    return (jnp.sum(d * d) / sample.shape[0]).astype(sample.dtype)


if __name__ == "__main__":
    key = jax.random.PRNGKey(0)
    k1, k2, k3, k4, k5 = jax.random.split(key, 5)

    # Typical discriminator output map: NCHW.
    x_f32 = jax.random.normal(k1, (2, 4, 16, 16), dtype=jnp.float32)     # lane-aligned, no mask
    x_bf16 = jax.random.normal(k2, (2, 4, 16, 16), dtype=jnp.bfloat16)   # native-dtype path
    x_mask = jax.random.normal(k3, (2, 4, 20, 20), dtype=jnp.float32)    # ragged rows -> masked last block
    x_tail = jax.random.normal(k4, (3, 5, 7, 6), dtype=jnp.float32)      # not lane-aligned -> prefix + XLA tail
    x_big = jax.random.normal(k5, (2, 4, 400, 400), dtype=jnp.float32)   # multi-block streaming + accumulator

    checks = [
        (x_f32, "real", 1e-5),
        (x_f32, "fake", 1e-5),
        (x_bf16, "real", 2e-2),
        (x_mask, "real", 1e-5),
        (x_tail, "fake", 1e-5),
        (x_big, "real", 2e-4),
    ]
    for x, mode, tol in checks:
        got = jax.block_until_ready(lsgan_adversarial_loss(x, mode))
        ref = _reference(x, mode)
        assert jnp.allclose(jnp.asarray(got, jnp.float32),
                            jnp.asarray(ref, jnp.float32),
                            rtol=tol, atol=tol), (x.shape, x.dtype, mode, got, ref)

    print("KERNEL_OK")
</pallas_src>

<mosaic_0001>
module attributes {stable_mosaic.version = 11 : i64} {
  func.func @_kernel(%arg0: i32, %arg1: i32, %arg2: memref<16x128xf32, #tpu.memory_space<vmem>>, %arg3: memref<1x8x128xf32, #tpu.memory_space<vmem>>) attributes {dimension_semantics = [#tpu.dimension_semantics<arbitrary>, #tpu.dimension_semantics<arbitrary>], iteration_bounds = array<i64: 1, 1>, scalar_prefetch = 0 : i64, scratch_operands = 0 : i64, tpu.core_type = #tpu.core_type<tc>, window_params = [{transform_indices = @transform_0, window_bounds = array<i64: 16, 128>}, {transform_indices = @transform_1, window_bounds = array<i64: 1, 8, 128>}]} {
    %c0_i32 = arith.constant 0 : i32
    %0 = arith.cmpi eq, %arg1, %c0_i32 : i32
    %1 = arith.extui %0 : i1 to i32
    %c0_i32_0 = arith.constant 0 : i32
    %2 = arith.cmpi ne, %1, %c0_i32_0 : i32
    scf.if %2 {
      %cst_10 = arith.constant 0.000000e+00 : f32
      %20 = vector.broadcast %cst_10 : f32 to vector<1x8x128xf32>
      %c0_11 = arith.constant 0 : index
      %c0_12 = arith.constant 0 : index
      %c0_13 = arith.constant 0 : index
      %21 = vector.load %arg3[%c0_11, %c0_12, %c0_13] : memref<1x8x128xf32, #tpu.memory_space<vmem>>, vector<1x8x128xf32>
      tpu.vector_store %arg3[%c0_11, %c0_12, %c0_13], %20 {strides = array<i32>} : memref<1x8x128xf32, #tpu.memory_space<vmem>>, vector<1x8x128xf32>,
    } else {
    }
    %c0 = arith.constant 0 : index
    %c0_1 = arith.constant 0 : index
    %c0_2 = arith.constant 0 : index
    %3 = vector.load %arg3[%c0, %c0_1, %c0_2] : memref<1x8x128xf32, #tpu.memory_space<vmem>>, vector<1x8x128xf32>
    %4 = vector.shape_cast %3 : vector<1x8x128xf32> to vector<8x128xf32>
    %cst = arith.constant 0.000000e+00 : f32
    %5 = vector.broadcast %cst : f32 to vector<8x128xf32>
    %c0_i32_3 = arith.constant 0 : i32
    %c16_i32 = arith.constant 16 : i32
    %6 = arith.muli %c0_i32_3, %c16_i32 : i32
    %7 = tpu.assume_multiple %6, 16 : i32
    %8 = arith.index_cast %7 : i32 to index
    %c0_4 = arith.constant 0 : index
    %9 = vector.load %arg2[%8, %c0_4] : memref<16x128xf32, #tpu.memory_space<vmem>>, vector<16x128xf32>
    %cst_5 = arith.constant 1.000000e+00 : f32
    %10 = vector.broadcast %cst_5 : f32 to vector<16x128xf32>
    %11 = arith.subf %9, %10 : vector<16x128xf32>
    %12 = arith.mulf %11, %11 : vector<16x128xf32>
    %13 = vector.shape_cast %12 : vector<16x128xf32> to vector<2x8x128xf32>
    %cst_6 = arith.constant dense<0.000000e+00> : vector<8x128xf32>
    %14 = vector.multi_reduction <add>, %13, %cst_6 [0] : vector<2x8x128xf32> to vector<8x128xf32>
    %15 = arith.addf %5, %14 : vector<8x128xf32>
    %c1_i32 = arith.constant 1 : i32
    %16 = arith.addf %4, %15 : vector<8x128xf32>
    %c0_7 = arith.constant 0 : index
    %c0_8 = arith.constant 0 : index
    %c0_9 = arith.constant 0 : index
    %17 = vector.load %arg3[%c0_7, %c0_8, %c0_9] : memref<1x8x128xf32, #tpu.memory_space<vmem>>, vector<1x8x128xf32>
    %18 = vector.shape_cast %17 : vector<1x8x128xf32> to vector<8x128xf32>
    %19 = vector.shape_cast %16 : vector<8x128xf32> to vector<1x8x128xf32>
    tpu.vector_store %arg3[%c0_7, %c0_8, %c0_9], %19 {strides = array<i32>} : memref<1x8x128xf32, #tpu.memory_space<vmem>>, vector<1x8x128xf32>,
    return
  }
  func.func @transform_0(%arg0: i32, %arg1: i32) -> (i32, i32) {
    %c1_i32 = arith.constant 1 : i32
    %0 = arith.muli %arg0, %c1_i32 : i32
    %1 = arith.addi %0, %arg1 : i32
    %c0_i32 = arith.constant 0 : i32
    %2 = arith.minsi %1, %c0_i32 : i32
    %c0_i32_0 = arith.constant 0 : i32
    %c0_i32_1 = arith.constant 0 : i32
    return %2, %c0_i32_0 : i32, i32
  }
  func.func @transform_1(%arg0: i32, %arg1: i32) -> (i32, i32, i32) {
    %c0_i32 = arith.constant 0 : i32
    %c0_i32_0 = arith.constant 0 : i32
    %c0_i32_1 = arith.constant 0 : i32
    return %arg0, %c0_i32, %c0_i32_0 : i32, i32, i32
  }
}

</mosaic_0001>

<llo_original>
// kernel: lsgan_adversarial_loss.1
$region0: #{lsgan_adversarial_loss.1}
  #allocation0 [shape = 'u32[]', space=smem, size = 0x4, offset = 0x4, fixed_abs, tag = 'smem constant byte address 0x4 - core index']
  #allocation1 [shape = 'u32[144,128]{1,0:T(1,128)}', space=vmem, size = 0x12000, scoped, tag = 'internal scratch']
  %s0 = inlined_call_operand.vmem [shape: f32[16,128], index: 0, kind: input, shape index: {}]
  %s1 = inlined_call_operand.vmem [shape: f32[1,8,128], index: 1, kind: output, shape index: {}]
  %s2 = sld [smem:[#allocation0]]
  $region18: #{lsgan_adversarial_loss.1} parent=0
    _
  %s4 = ssub.s32 1, %s2
  %s5 = scalar_select 0, %s4, %s2
  // Predicated region
  $region2: #{lsgan_adversarial_loss.1} parent=0 // pred_check
    _
  $region3: #{lsgan_adversarial_loss.1} parent=0 // pred_check_branch
    %7 = sbr.rel (0) target = $region5
  $region4: #{lsgan_adversarial_loss.1} parent=0 // pred_region
    %s8 = sadd.s32 0, 0
    %p9 = scmp.lt.s32.totalorder %s8, 0
    %s10 = scalar_select %p9, %s8, 0
    %s11 = smul.u32 2, %s10
    %p12 = scmp.lt.s32.totalorder %s11, 1
    %s13 = scalar_select %p12, %s11, 1
    %s14 = smul.addr %s13, 8
    %s15 = scalar_lea.vmem %s0, %s14
    %s16 = sadd.s32 0, 0
    %p17 = scmp.lt.s32.totalorder %s16, 0
    %s18 = scalar_select %p17, %s16, 0
    %s19 = smul.u32 2, %s18
  $region5: #{lsgan_adversarial_loss.1} parent=0 // pred_fallthru
    _
  %s20 = sadd.s32 0, 0
  %p21 = scmp.lt.s32.totalorder %s20, 0
  %s22 = scalar_select %p21, %s20, 0
  %s23 = smul.u32 2, %s22
  %p24 = scmp.lt.s32.totalorder %s23, 1
  %s25 = scalar_select %p24, %s23, 1
  %s26 = smul.addr %s25, 8
  %s27 = scalar_lea.vmem %s0, %s26
  %s28 = sadd.s32 0, 0
  %p29 = scmp.lt.s32.totalorder %s28, 0
  %s30 = scalar_select %p29, %s28, 0
  %s31 = smul.u32 2, %s30
  %p32 = scmp.lt.s32.totalorder %s31, 1
  %s33 = scalar_select %p32, %s31, 1
  %s34 = smul.addr %s33, 8
  %s35 = scalar_lea.vmem %s0, %s34
  %s36 = sadd.s32 0, 0
  %p37 = scmp.lt.s32.totalorder %s36, 0
  %s38 = scalar_select %p37, %s36, 0
  %s39 = smul.u32 2, %s38
  %p40 = scmp.eq.s32.totalorder 0, 0
  // Predicated region
  $region6: #{lsgan_adversarial_loss.1} parent=0 // pred_check
    %p41 = pneg %p40
  $region7: #{lsgan_adversarial_loss.1} parent=0 // pred_check_branch
    %43 = sbr.rel (%p41) target = $region9
  $region8: #{lsgan_adversarial_loss.1} parent=0 // pred_region
    %44 = vst [vmem:[%s1] sm:$0xff] 0.0
  $region9: #{lsgan_adversarial_loss.1} parent=0 // pred_fallthru
    _
  %v45 = vld [vmem:[%s1] sm:$0xff]
  %v46 = vld [vmem:[%s35] sm:$0xff]
  %v47 = vld [vmem:[%s35 + $0x8] sm:$0xff]
  %v48 = vsub.f32 %v46, 1.0
  %v49 = vsub.f32 %v47, 1.0
  %v50 = vmul.f32 %v48, %v48
  %v51 = vmul.f32 %v49, %v49
  %v52 = vadd.f32 %v50, %v51
  %v53 = vadd.f32 %v52, 0.0
  %v54 = vadd.f32 %v45, %v53
  %55 = vst [vmem:[%s1] sm:$0xff] %v54
  // Predicated region
  $region10: #{lsgan_adversarial_loss.1} parent=0 // pred_check
    _
  $region11: #{lsgan_adversarial_loss.1} parent=0 // pred_check_branch
    %57 = sbr.rel (0) target = $region13
  $region12: #{lsgan_adversarial_loss.1} parent=0 // pred_region
    _
  $region13: #{lsgan_adversarial_loss.1} parent=0 // pred_fallthru
    _
  // Predicated region
  $region14: #{lsgan_adversarial_loss.1} parent=0 // pred_check
    _
  $region15: #{lsgan_adversarial_loss.1} parent=0 // pred_check_branch
    %59 = sbr.rel (0) target = $region17
  $region16: #{lsgan_adversarial_loss.1} parent=0 // pred_region
    _
  $region17: #{lsgan_adversarial_loss.1} parent=0 // pred_fallthru
    _

</llo_original>
